<compile_context>
chip_gen: v6e
topology: v6e:2x2x1
jax: 0.10.0
libtpu: 0.0.40
codegen_flags: <defaults>
</compile_context>

<pallas_src>
import functools

import jax
import jax.numpy as jnp
from jax.experimental import pallas as pl
from jax.experimental.pallas import tpu as pltpu


def _pool_conv_kernel(x_ref, w1_ref, w2_ref, sb_ref, conv_ref, pool_ref, *,
                      kh, kw, Hp, Wp, Cin, Cout, slope):
    R = x_ref.shape[0]          # nb * Hp rows; each row is (image, output-row)
    Cd = kw * Cin               # "dilated" channel slots per output column
    L1 = Wp * Cd                # lane width of pooled activations (== W * Cin)
    L2 = Wp * Cout              # lane width of conv activations

    # ---- MaxPool2d(kh, kw): lane-dense 2-D ops ------------------------------
    # x_ref: (R, kh*L1), lanes ordered (kh-tap, w, c).
    x = x_ref[...]
    rowmax = x[:, 0:L1]
    for i in range(1, kh):                        # reduce over pool rows
        rowmax = jnp.maximum(rowmax, x[:, i * L1:(i + 1) * L1])
    m = rowmax
    for j in range(1, kw):                        # reduce over pool cols: lane
        m = jnp.maximum(m, pltpu.roll(rowmax, L1 - j * Cin, axis=1))  # roll (XLU)
    # m: (R, L1). The pooled value sits in the j == 0 slot of every kw*Cin lane
    # group; j != 0 slots hold ignored junk (incl. roll wraparound), dropped by
    # the wrapper and hit only by zero blocks in the packed layer-1 weights.
    pool_ref[...] = m.astype(pool_ref.dtype)

    # ---- ConvBlock: two (conv3x3 pad=1 + BN + LeakyReLU) --------------------
    # Row-border masks, hoisted once: rows are (n, hp); the same mask zeroes
    # SAME top/bottom padding, cross-image leakage and the roll wraparound.
    hp = jax.lax.broadcasted_iota(jnp.int32, (R, 1), 0) % Hp
    mask_top = (hp > 0).astype(jnp.float32)           # row hp-1 exists
    mask_bot = (hp < Hp - 1).astype(jnp.float32)      # row hp+1 exists

    sb = sb_ref[...]                                  # (4, L2): s1, b1, s2, b2
    s1, b1, s2, b2 = sb[0:1, :], sb[1:2, :], sb[2:3, :], sb[3:4, :]

    def conv3x3(a, w_ref):
        # 3x3 SAME conv as 3 whole-plane MXU dots (one per vertical tap).  The
        # horizontal taps + left/right padding live in the block-tridiagonal
        # weights.  bf16 operands, f32 accumulation.
        up = pltpu.roll(a, 1, axis=0) * mask_top       # a'[r] = a[r-1]
        dn = pltpu.roll(a, R - 1, axis=0) * mask_bot   # a'[r] = a[r+1]
        acc = jnp.dot(up.astype(jnp.bfloat16), w_ref[0],
                      preferred_element_type=jnp.float32)
        acc = acc + jnp.dot(a.astype(jnp.bfloat16), w_ref[1],
                            preferred_element_type=jnp.float32)
        acc = acc + jnp.dot(dn.astype(jnp.bfloat16), w_ref[2],
                            preferred_element_type=jnp.float32)
        return acc

    y1 = conv3x3(m, w1_ref) * s1 + b1                  # folded BN (eval mode)
    a1 = jnp.where(y1 > 0, y1, slope * y1)             # LeakyReLU(0.01)
    y2 = conv3x3(a1, w2_ref) * s2 + b2
    a2 = jnp.where(y2 > 0, y2, slope * y2)
    conv_ref[...] = a2.astype(conv_ref.dtype)


def _pack_conv_weight_dy(w, Wp):
    """w: (3, 3, ci, co) HWIO -> (3, Wp*ci, Wp*co).

    For each vertical tap dy, the three horizontal taps are merged into one
    block-tridiagonal matrix over output columns: block (q_in, q_out) holds
    w[dy, q_in - q_out + 1] when |q_in - q_out| <= 1 and zeros otherwise, so
    the SAME left/right zero padding is handled by the missing border blocks.
    """
    _, _, ci, co = w.shape
    q_in = jnp.arange(Wp)[:, None]
    q_out = jnp.arange(Wp)[None, :]
    mats = []
    for dy in range(3):
        acc = jnp.zeros((Wp, ci, Wp, co), w.dtype)
        for dx in range(3):
            sel = (q_in - q_out == dx - 1).astype(w.dtype)          # (Wp, Wp)
            acc = acc + sel[:, None, :, None] * w[dy, dx][None, :, None, :]
        mats.append(acc.reshape(Wp * ci, Wp * co))
    return jnp.stack(mats, axis=0)


def pool_conv_block(x, params, *, kernel_size=(2, 2)):
    """x: (N, Cin, H, W) float32 (NCHW, like PyTorch). Returns (conv, pool) in NCHW."""
    kh, kw = kernel_size
    N, Cin, H, W = x.shape
    Hp, Wp = H // kh, W // kw
    # MaxPool2d floors: crop trailing rows/cols that don't fill a window.
    x = x[:, :, :Hp * kh, :Wp * kw]
    W = Wp * kw

    w1, s1, b1, w2, s2, b2 = params      # w*: HWIO, s*/b*: (1, Cout) folded BN
    Cout = w1.shape[-1]
    Cd = kw * Cin
    L1, L2 = Wp * Cd, Wp * Cout

    # NCHW -> NHWC once; a free reshape then gives rows = (n, hp), lanes =
    # (kh-tap, w, c).  No pooling-window transpose is materialized in HBM.
    x_nhwc = jnp.transpose(x, (0, 2, 3, 1)).astype(jnp.float32)
    x2d = x_nhwc.reshape(N * Hp, kh * W * Cin)

    # Lane-packed bf16 weights.  Layer 1 consumes the "dilated" pooled layout
    # (kw*Cin channel slots per output column; the kw-1 extra slots get zero
    # weights, so no in-kernel compaction is needed).
    if kw > 1:
        w1d = jnp.concatenate([w1] + [jnp.zeros_like(w1)] * (kw - 1), axis=2)
    else:
        w1d = w1
    w1p = _pack_conv_weight_dy(w1d.astype(jnp.float32), Wp).astype(jnp.bfloat16)
    w2p = _pack_conv_weight_dy(w2.astype(jnp.float32), Wp).astype(jnp.bfloat16)

    # BN scale/bias tiled to lane layout, fused into a single (4, L2) operand.
    def _lanes(v):
        return jnp.tile(v.reshape(1, Cout), (1, Wp)).reshape(-1)
    sbp = jnp.stack([_lanes(s1), _lanes(b1), _lanes(s2), _lanes(b2)],
                    axis=0).astype(jnp.float32)                      # (4, L2)

    # Batch items per grid step: keep grid >= 2 when N allows it (pipelining +
    # v7x dual-TC), cap per-step matmul M at 512 rows, and keep nb*Hp a
    # multiple of 8 (BlockSpec sublane constraint) unless one block covers the
    # whole array (always legal fallback).
    cands = [c for c in range(1, N + 1)
             if N % c == 0 and (c * Hp) % 8 == 0 and c * Hp <= 512]
    multi = [c for c in cands if N // c >= 2]
    nb = max(multi) if multi else (max(cands) if cands else N)
    grid = (N // nb,)

    kernel = functools.partial(_pool_conv_kernel, kh=kh, kw=kw, Hp=Hp, Wp=Wp,
                               Cin=Cin, Cout=Cout, slope=0.01)

    conv2d, pool2d = pl.pallas_call(
        kernel,
        out_shape=(jax.ShapeDtypeStruct((N * Hp, L2), jnp.float32),
                   jax.ShapeDtypeStruct((N * Hp, L1), jnp.float32)),
        grid=grid,
        in_specs=[
            pl.BlockSpec((nb * Hp, kh * W * Cin), lambda b: (b, 0)),
            pl.BlockSpec((3, L1, L2), lambda b: (0, 0, 0)),
            pl.BlockSpec((3, L2, L2), lambda b: (0, 0, 0)),
            pl.BlockSpec((4, L2), lambda b: (0, 0)),
        ],
        out_specs=(pl.BlockSpec((nb * Hp, L2), lambda b: (b, 0)),
                   pl.BlockSpec((nb * Hp, L1), lambda b: (b, 0))),
        compiler_params=pltpu.CompilerParams(
            dimension_semantics=("parallel",),
            vmem_limit_bytes=32 * 1024 * 1024),
    )(x2d, w1p, w2p, sbp)

    # Un-pack the lane-dense 2-D slabs back to NCHW.
    conv = jnp.transpose(conv2d.reshape(N, Hp, Wp, Cout), (0, 3, 1, 2))
    pool_d = pool2d.reshape(N, Hp, Wp, kw, Cin)[:, :, :, 0, :]  # drop dilated slots
    pool = jnp.transpose(pool_d, (0, 3, 1, 2))
    return conv, pool


if __name__ == "__main__":
    key = jax.random.PRNGKey(0)
    keys = jax.random.split(key, 3)
    N, Cin, H, W = 2, 4, 16, 16
    Cout = 8
    eps = 1e-5

    x = jax.random.normal(keys[0], (N, Cin, H, W), jnp.float32)

    def make_layer(k, cin, cout):
        ks = jax.random.split(k, 6)
        w = 0.2 * jax.random.normal(ks[0], (3, 3, cin, cout), jnp.float32)  # HWIO
        bc = 0.1 * jax.random.normal(ks[1], (cout,), jnp.float32)           # conv bias
        gamma = 1.0 + 0.1 * jax.random.normal(ks[2], (cout,), jnp.float32)
        beta = 0.1 * jax.random.normal(ks[3], (cout,), jnp.float32)
        mean = 0.1 * jax.random.normal(ks[4], (cout,), jnp.float32)
        var = 0.5 + jnp.abs(jax.random.normal(ks[5], (cout,), jnp.float32))
        return w, bc, gamma, beta, mean, var

    layer1 = make_layer(keys[1], Cin, Cout)
    layer2 = make_layer(keys[2], Cout, Cout)

    def fold(layer):
        w, bc, gamma, beta, mean, var = layer
        scale = gamma * jax.lax.rsqrt(var + eps)
        bias = (bc - mean) * scale + beta
        return w, scale.reshape(1, -1), bias.reshape(1, -1)

    w1, s1, b1 = fold(layer1)
    w2, s2, b2 = fold(layer2)
    params = (w1, s1, b1, w2, s2, b2)

    conv, pool = pool_conv_block(x, params, kernel_size=(2, 2))
    jax.block_until_ready((conv, pool))

    # --- pure-JAX reference (eval-mode BN), sanity check -------------------
    def ref_layer(xin, layer):
        w, bc, gamma, beta, mean, var = layer
        y = jax.lax.conv_general_dilated(
            xin, w, (1, 1), "SAME",
            dimension_numbers=("NCHW", "HWIO", "NCHW"),
            precision=jax.lax.Precision.HIGHEST)
        y = y + bc[None, :, None, None]
        y = ((y - mean[None, :, None, None])
             * (gamma * jax.lax.rsqrt(var + eps))[None, :, None, None]
             + beta[None, :, None, None])
        return jnp.where(y > 0, y, 0.01 * y)

    pool_ref = jax.lax.reduce_window(x, -jnp.inf, jax.lax.max,
                                     (1, 1, 2, 2), (1, 1, 2, 2), "VALID")
    conv_ref = ref_layer(ref_layer(pool_ref, layer1), layer2)

    # Pool path is exact f32; conv tolerance reflects bf16 MXU operands
    # (f32 accumulation) vs. the HIGHEST-precision f32 reference.
    assert jnp.allclose(pool, pool_ref, atol=1e-5, rtol=1e-5)
    assert jnp.allclose(conv, conv_ref, atol=5e-2, rtol=5e-2)
    print("KERNEL_OK")
</pallas_src>

<mosaic_0001>
module attributes {stable_mosaic.version = 11 : i64} {
  func.func @_pool_conv_kernel(%arg0: i32, %arg1: memref<8x128xf32, #tpu.memory_space<vmem>>, %arg2: memref<3x64x64xbf16, #tpu.memory_space<vmem>>, %arg3: memref<3x64x64xbf16, #tpu.memory_space<vmem>>, %arg4: memref<4x64xf32, #tpu.memory_space<vmem>>, %arg5: memref<8x64xf32, #tpu.memory_space<vmem>>, %arg6: memref<8x64xf32, #tpu.memory_space<vmem>>) attributes {dimension_semantics = [#tpu.dimension_semantics<parallel>], iteration_bounds = array<i64: 2>, scalar_prefetch = 0 : i64, scratch_operands = 0 : i64, tpu.core_type = #tpu.core_type<tc>, window_params = [{transform_indices = @transform_0, window_bounds = array<i64: 8, 128>}, {pipeline_mode = #tpu.pipeline_mode<synchronous>, transform_indices = @transform_1, window_bounds = array<i64: 3, 64, 64>}, {pipeline_mode = #tpu.pipeline_mode<synchronous>, transform_indices = @transform_2, window_bounds = array<i64: 3, 64, 64>}, {pipeline_mode = #tpu.pipeline_mode<synchronous>, transform_indices = @transform_3, window_bounds = array<i64: 4, 64>}, {transform_indices = @transform_4, window_bounds = array<i64: 8, 64>}, {transform_indices = @transform_5, window_bounds = array<i64: 8, 64>}]} {
    %c0 = arith.constant 0 : index
    %c0_0 = arith.constant 0 : index
    %0 = vector.load %arg1[%c0, %c0_0] : memref<8x128xf32, #tpu.memory_space<vmem>>, vector<8x128xf32>
    %1 = vector.extract_strided_slice %0 {offsets = [0, 0], sizes = [8, 64], strides = [1, 1]} : vector<8x128xf32> to vector<8x64xf32>
    %2 = vector.extract_strided_slice %0 {offsets = [0, 64], sizes = [8, 64], strides = [1, 1]} : vector<8x128xf32> to vector<8x64xf32>
    %3 = arith.maximumf %1, %2 : vector<8x64xf32>
    %c60_i32 = arith.constant 60 : i32
    %4 = tpu.dynamic_rotate %3 by %c60_i32 dim 1 : vector<8x64xf32>, i32 -> vector<8x64xf32>
    %5 = arith.maximumf %3, %4 : vector<8x64xf32>
    %c0_1 = arith.constant 0 : index
    %c0_2 = arith.constant 0 : index
    %6 = vector.load %arg6[%c0_1, %c0_2] : memref<8x64xf32, #tpu.memory_space<vmem>>, vector<8x64xf32>
    tpu.vector_store %arg6[%c0_1, %c0_2], %5 {strides = array<i32>} : memref<8x64xf32, #tpu.memory_space<vmem>>, vector<8x64xf32>,
    %7 = tpu.iota {dimensions = array<i32: 0>} : vector<8x1xi32>
    %c8_i32 = arith.constant 8 : i32
    %c0_i32 = arith.constant 0 : i32
    %8 = arith.cmpi eq, %c8_i32, %c0_i32 : i32
    %c1_i32 = arith.constant 1 : i32
    %9 = arith.select %8, %c1_i32, %c8_i32 : i32
    %10 = vector.broadcast %9 : i32 to vector<8x1xi32>
    %11 = arith.remsi %7, %10 : vector<8x1xi32>
    %c0_i32_3 = arith.constant 0 : i32
    %12 = vector.broadcast %c0_i32_3 : i32 to vector<8x1xi32>
    %13 = arith.cmpi ne, %11, %12 : vector<8x1xi32>
    %c0_i32_4 = arith.constant 0 : i32
    %14 = vector.broadcast %c0_i32_4 : i32 to vector<8x1xi32>
    %15 = arith.cmpi slt, %11, %14 : vector<8x1xi32>
    %c0_i32_5 = arith.constant 0 : i32
    %16 = arith.cmpi slt, %9, %c0_i32_5 : i32
    %17 = vector.broadcast %16 : i1 to vector<8x1xi1>
    %18 = vector.broadcast %17 : vector<8x1xi1> to vector<8x1xi1>
    %19 = arith.xori %15, %18 : vector<8x1xi1>
    %20 = arith.andi %19, %13 : vector<8x1xi1>
    %21 = vector.broadcast %9 : i32 to vector<8x1xi32>
    %22 = arith.addi %11, %21 : vector<8x1xi32>
    %23 = arith.select %20, %22, %11 : vector<8x1xi1>, vector<8x1xi32>
    %c0_i32_6 = arith.constant 0 : i32
    %24 = vector.broadcast %c0_i32_6 : i32 to vector<8x1xi32>
    %25 = arith.cmpi sgt, %23, %24 : vector<8x1xi32>
    %26 = arith.extui %25 : vector<8x1xi1> to vector<8x1xi32>
    %27 = arith.sitofp %26 : vector<8x1xi32> to vector<8x1xf32>
    %c7_i32 = arith.constant 7 : i32
    %28 = vector.broadcast %c7_i32 : i32 to vector<8x1xi32>
    %29 = arith.cmpi slt, %23, %28 : vector<8x1xi32>
    %30 = arith.extui %29 : vector<8x1xi1> to vector<8x1xi32>
    %31 = arith.sitofp %30 : vector<8x1xi32> to vector<8x1xf32>
    %c0_7 = arith.constant 0 : index
    %c0_8 = arith.constant 0 : index
    %32 = vector.load %arg4[%c0_7, %c0_8] : memref<4x64xf32, #tpu.memory_space<vmem>>, vector<4x64xf32>
    %33 = vector.extract_strided_slice %32 {offsets = [0, 0], sizes = [1, 64], strides = [1, 1]} : vector<4x64xf32> to vector<1x64xf32>
    %34 = vector.extract_strided_slice %32 {offsets = [1, 0], sizes = [1, 64], strides = [1, 1]} : vector<4x64xf32> to vector<1x64xf32>
    %35 = vector.extract_strided_slice %32 {offsets = [2, 0], sizes = [1, 64], strides = [1, 1]} : vector<4x64xf32> to vector<1x64xf32>
    %36 = vector.extract_strided_slice %32 {offsets = [3, 0], sizes = [1, 64], strides = [1, 1]} : vector<4x64xf32> to vector<1x64xf32>
    %c1_i32_9 = arith.constant 1 : i32
    %37 = tpu.dynamic_rotate %5 by %c1_i32_9 dim 0 : vector<8x64xf32>, i32 -> vector<8x64xf32>
    %38 = vector.broadcast %27 : vector<8x1xf32> to vector<8x64xf32>
    %39 = arith.mulf %37, %38 : vector<8x64xf32>
    %c7_i32_10 = arith.constant 7 : i32
    %40 = tpu.dynamic_rotate %5 by %c7_i32_10 dim 0 : vector<8x64xf32>, i32 -> vector<8x64xf32>
    %41 = vector.broadcast %31 : vector<8x1xf32> to vector<8x64xf32>
    %42 = arith.mulf %40, %41 : vector<8x64xf32>
    %43 = arith.truncf %39 : vector<8x64xf32> to vector<8x64xbf16>
    %c0_11 = arith.constant 0 : index
    %c0_12 = arith.constant 0 : index
    %c0_13 = arith.constant 0 : index
    %44 = vector.load %arg2[%c0_11, %c0_12, %c0_13] : memref<3x64x64xbf16, #tpu.memory_space<vmem>>, vector<1x64x64xbf16>
    %45 = vector.shape_cast %44 : vector<1x64x64xbf16> to vector<64x64xbf16>
    %cst = arith.constant dense<0.000000e+00> : vector<8x64xf32>
    %46 = tpu.matmul %43, %45, %cst {dimension_numbers = #tpu.dot_dimension_numbers<[1], [0], [0], [1], [0, 0, 1, 1], [], []>} : vector<8x64xbf16>, vector<64x64xbf16>, vector<8x64xf32> -> vector<8x64xf32>
    %47 = arith.truncf %5 : vector<8x64xf32> to vector<8x64xbf16>
    %c1 = arith.constant 1 : index
    %c0_14 = arith.constant 0 : index
    %c0_15 = arith.constant 0 : index
    %48 = vector.load %arg2[%c1, %c0_14, %c0_15] : memref<3x64x64xbf16, #tpu.memory_space<vmem>>, vector<1x64x64xbf16>
    %49 = vector.shape_cast %48 : vector<1x64x64xbf16> to vector<64x64xbf16>
    %cst_16 = arith.constant dense<0.000000e+00> : vector<8x64xf32>
    %50 = tpu.matmul %47, %49, %cst_16 {dimension_numbers = #tpu.dot_dimension_numbers<[1], [0], [0], [1], [0, 0, 1, 1], [], []>} : vector<8x64xbf16>, vector<64x64xbf16>, vector<8x64xf32> -> vector<8x64xf32>
    %51 = arith.addf %46, %50 : vector<8x64xf32>
    %52 = arith.truncf %42 : vector<8x64xf32> to vector<8x64xbf16>
    %c2 = arith.constant 2 : index
    %c0_17 = arith.constant 0 : index
    %c0_18 = arith.constant 0 : index
    %53 = vector.load %arg2[%c2, %c0_17, %c0_18] : memref<3x64x64xbf16, #tpu.memory_space<vmem>>, vector<1x64x64xbf16>
    %54 = vector.shape_cast %53 : vector<1x64x64xbf16> to vector<64x64xbf16>
    %cst_19 = arith.constant dense<0.000000e+00> : vector<8x64xf32>
    %55 = tpu.matmul %52, %54, %cst_19 {dimension_numbers = #tpu.dot_dimension_numbers<[1], [0], [0], [1], [0, 0, 1, 1], [], []>} : vector<8x64xbf16>, vector<64x64xbf16>, vector<8x64xf32> -> vector<8x64xf32>
    %56 = arith.addf %51, %55 : vector<8x64xf32>
    %57 = vector.broadcast %33 : vector<1x64xf32> to vector<8x64xf32>
    %58 = arith.mulf %56, %57 : vector<8x64xf32>
    %59 = vector.broadcast %34 : vector<1x64xf32> to vector<8x64xf32>
    %60 = arith.addf %58, %59 : vector<8x64xf32>
    %cst_20 = arith.constant 0.000000e+00 : f32
    %61 = vector.broadcast %cst_20 : f32 to vector<8x64xf32>
    %62 = arith.cmpf ogt, %60, %61 : vector<8x64xf32>
    %cst_21 = arith.constant 0.00999999977 : f32
    %63 = vector.broadcast %cst_21 : f32 to vector<8x64xf32>
    %64 = arith.mulf %63, %60 : vector<8x64xf32>
    %65 = arith.select %62, %60, %64 : vector<8x64xi1>, vector<8x64xf32>
    %c1_i32_22 = arith.constant 1 : i32
    %66 = tpu.dynamic_rotate %65 by %c1_i32_22 dim 0 : vector<8x64xf32>, i32 -> vector<8x64xf32>
    %67 = vector.broadcast %27 : vector<8x1xf32> to vector<8x64xf32>
    %68 = arith.mulf %66, %67 : vector<8x64xf32>
    %c7_i32_23 = arith.constant 7 : i32
    %69 = tpu.dynamic_rotate %65 by %c7_i32_23 dim 0 : vector<8x64xf32>, i32 -> vector<8x64xf32>
    %70 = vector.broadcast %31 : vector<8x1xf32> to vector<8x64xf32>
    %71 = arith.mulf %69, %70 : vector<8x64xf32>
    %72 = arith.truncf %68 : vector<8x64xf32> to vector<8x64xbf16>
    %c0_24 = arith.constant 0 : index
    %c0_25 = arith.constant 0 : index
    %c0_26 = arith.constant 0 : index
    %73 = vector.load %arg3[%c0_24, %c0_25, %c0_26] : memref<3x64x64xbf16, #tpu.memory_space<vmem>>, vector<1x64x64xbf16>
    %74 = vector.shape_cast %73 : vector<1x64x64xbf16> to vector<64x64xbf16>
    %cst_27 = arith.constant dense<0.000000e+00> : vector<8x64xf32>
    %75 = tpu.matmul %72, %74, %cst_27 {dimension_numbers = #tpu.dot_dimension_numbers<[1], [0], [0], [1], [0, 0, 1, 1], [], []>} : vector<8x64xbf16>, vector<64x64xbf16>, vector<8x64xf32> -> vector<8x64xf32>
    %76 = arith.truncf %65 : vector<8x64xf32> to vector<8x64xbf16>
    %c1_28 = arith.constant 1 : index
    %c0_29 = arith.constant 0 : index
    %c0_30 = arith.constant 0 : index
    %77 = vector.load %arg3[%c1_28, %c0_29, %c0_30] : memref<3x64x64xbf16, #tpu.memory_space<vmem>>, vector<1x64x64xbf16>
    %78 = vector.shape_cast %77 : vector<1x64x64xbf16> to vector<64x64xbf16>
    %cst_31 = arith.constant dense<0.000000e+00> : vector<8x64xf32>
    %79 = tpu.matmul %76, %78, %cst_31 {dimension_numbers = #tpu.dot_dimension_numbers<[1], [0], [0], [1], [0, 0, 1, 1], [], []>} : vector<8x64xbf16>, vector<64x64xbf16>, vector<8x64xf32> -> vector<8x64xf32>
    %80 = arith.addf %75, %79 : vector<8x64xf32>
    %81 = arith.truncf %71 : vector<8x64xf32> to vector<8x64xbf16>
    %c2_32 = arith.constant 2 : index
    %c0_33 = arith.constant 0 : index
    %c0_34 = arith.constant 0 : index
    %82 = vector.load %arg3[%c2_32, %c0_33, %c0_34] : memref<3x64x64xbf16, #tpu.memory_space<vmem>>, vector<1x64x64xbf16>
    %83 = vector.shape_cast %82 : vector<1x64x64xbf16> to vector<64x64xbf16>
    %cst_35 = arith.constant dense<0.000000e+00> : vector<8x64xf32>
    %84 = tpu.matmul %81, %83, %cst_35 {dimension_numbers = #tpu.dot_dimension_numbers<[1], [0], [0], [1], [0, 0, 1, 1], [], []>} : vector<8x64xbf16>, vector<64x64xbf16>, vector<8x64xf32> -> vector<8x64xf32>
    %85 = arith.addf %80, %84 : vector<8x64xf32>
    %86 = vector.broadcast %35 : vector<1x64xf32> to vector<8x64xf32>
    %87 = arith.mulf %85, %86 : vector<8x64xf32>
    %88 = vector.broadcast %36 : vector<1x64xf32> to vector<8x64xf32>
    %89 = arith.addf %87, %88 : vector<8x64xf32>
    %cst_36 = arith.constant 0.000000e+00 : f32
    %90 = vector.broadcast %cst_36 : f32 to vector<8x64xf32>
    %91 = arith.cmpf ogt, %89, %90 : vector<8x64xf32>
    %cst_37 = arith.constant 0.00999999977 : f32
    %92 = vector.broadcast %cst_37 : f32 to vector<8x64xf32>
    %93 = arith.mulf %92, %89 : vector<8x64xf32>
    %94 = arith.select %91, %89, %93 : vector<8x64xi1>, vector<8x64xf32>
    %c0_38 = arith.constant 0 : index
    %c0_39 = arith.constant 0 : index
    %95 = vector.load %arg5[%c0_38, %c0_39] : memref<8x64xf32, #tpu.memory_space<vmem>>, vector<8x64xf32>
    tpu.vector_store %arg5[%c0_38, %c0_39], %94 {strides = array<i32>} : memref<8x64xf32, #tpu.memory_space<vmem>>, vector<8x64xf32>,
    return
  }
  func.func @transform_0(%arg0: i32) -> (i32, i32) {
    %c0_i32 = arith.constant 0 : i32
    %c0_i32_0 = arith.constant 0 : i32
    return %arg0, %c0_i32 : i32, i32
  }
  func.func @transform_1(%arg0: i32) -> (i32, i32, i32) {
    %c0_i32 = arith.constant 0 : i32
    %c0_i32_0 = arith.constant 0 : i32
    %c0_i32_1 = arith.constant 0 : i32
    %c0_i32_2 = arith.constant 0 : i32
    return %c0_i32, %c0_i32_0, %c0_i32_1 : i32, i32, i32
  }
  func.func @transform_2(%arg0: i32) -> (i32, i32, i32) {
    %c0_i32 = arith.constant 0 : i32
    %c0_i32_0 = arith.constant 0 : i32
    %c0_i32_1 = arith.constant 0 : i32
    %c0_i32_2 = arith.constant 0 : i32
    return %c0_i32, %c0_i32_0, %c0_i32_1 : i32, i32, i32
  }
  func.func @transform_3(%arg0: i32) -> (i32, i32) {
    %c0_i32 = arith.constant 0 : i32
    %c0_i32_0 = arith.constant 0 : i32
    %c0_i32_1 = arith.constant 0 : i32
    return %c0_i32, %c0_i32_0 : i32, i32
  }
  func.func @transform_4(%arg0: i32) -> (i32, i32) {
    %c0_i32 = arith.constant 0 : i32
    %c0_i32_0 = arith.constant 0 : i32
    return %arg0, %c0_i32 : i32, i32
  }
  func.func @transform_5(%arg0: i32) -> (i32, i32) {
    %c0_i32 = arith.constant 0 : i32
    %c0_i32_0 = arith.constant 0 : i32
    return %arg0, %c0_i32 : i32, i32
  }
}

</mosaic_0001>

<llo_original>
// kernel: tpu_custom_call.1
$region0: #{tpu_custom_call.1}
  #allocation0 [shape = 'u32[]', space=smem, size = 0x4, offset = 0x4, fixed_abs, tag = 'smem constant byte address 0x4 - core index']
  #allocation1 [shape = 'u32[144,128]{1,0:T(1,128)}', space=vmem, size = 0x12000, scoped, tag = 'internal scratch']
  %s0 = inlined_call_operand.hbm [shape: f32[16,128], index: 0, kind: input, shape index: {}]
  %s1 = inlined_call_operand.hbm [shape: bf16[3,64,64], index: 1, kind: input, shape index: {}]
  %s2 = inlined_call_operand.hbm [shape: bf16[3,64,64], index: 2, kind: input, shape index: {}]
  %s3 = inlined_call_operand.vmem [shape: f32[4,64], index: 3, kind: input, shape index: {}]
  %s4 = inlined_call_operand.hbm [shape: f32[16,64], index: 4, kind: output, shape index: {0}]
  %s5 = inlined_call_operand.hbm [shape: f32[16,64], index: 5, kind: output, shape index: {1}]
  %6 = xla_tuple %s4, %s5
  %s7 = sld [smem:[#allocation0]]
  $region69: #{tpu_custom_call.1} parent=0
    _
  %s9 = ssub.s32 1, %s7
  %s10 = scalar_select 0, %s9, %s7
  $region1: #{tpu_custom_call.1} parent=0
    #allocation2 [shape = 'u8[8192]{0}', space=vmem, size = 0x2000, scoped, tag = 'input window, operand 0']
    #allocation3 [shape = 's32[2]{0}', space=sflag, size = 0x8, scoped, tag = 'scoped memory for tpu_custom_call.1']
    #allocation4 [shape = 's32[2]{0}', space=sflag, size = 0x8, scoped, tag = 'scoped memory for tpu_custom_call.1']
    #allocation5 [shape = 'u8[49152]{0}', space=vmem, size = 0xc000, scoped, tag = 'input window, operand 1, single buffered']
    #allocation6 [shape = 's32[1]{0}', space=sflag, size = 0x4, scoped, tag = 'scoped memory for tpu_custom_call.1']
    #allocation7 [shape = 'u8[49152]{0}', space=vmem, size = 0xc000, scoped, tag = 'input window, operand 2, single buffered']
    #allocation8 [shape = 'u8[8192]{0}', space=vmem, size = 0x2000, scoped, tag = 'output window, operand 0']
    #allocation9 [shape = 'u8[8192]{0}', space=vmem, size = 0x2000, scoped, tag = 'output window, operand 1']
    #allocation10 [shape = 's32[2]{0}', space=sflag, size = 0x8, scoped, tag = 'scoped memory for tpu_custom_call.1']
    %11 = vsyncpa [#allocation3], 0
    %s12 = scalar_lea.sflag [#allocation3], 1
    %13 = vsyncpa %s12, 0
    %14 = vsyncpa [#allocation6], 0
    %15 = vsyncpa [#allocation4], 0
    %s16 = scalar_lea.sflag [#allocation4], 1
    %17 = vsyncpa %s16, 0
    %18 = vsyncpa [#allocation10], 0
    %s19 = scalar_lea.sflag [#allocation10], 1
    %20 = vsyncpa %s19, 0
    loop: start=0, step=1, limit=4
    $region2: #{tpu_custom_call.1} parent=1 // loop_pre_header
      _
    $region3: #{tpu_custom_call.1} parent=1 // loop_header
      %s22 = sphi 0, %s26
      %p23 = scmp.ge.s32.totalorder %s22, 4
      %s32 = sphi 0, %s34
      %s35 = sphi 0, %s32
      %s36 = sphi 0, %s35
      %s52 = sphi 0, %s36
      %s56 = sphi 0, %s56
      %s58 = sphi 0, %s56
      %s59 = sphi 0, %s58
      %s73 = sphi 0, %s59
      %s77 = sphi 0, %s77
      %s79 = sphi 0, %s77
      %s80 = sphi 0, %s79
      %s94 = sphi 0, %s80
      %s98 = sphi 0, %s98
      %s100 = sphi 0, %s98
      %s101 = sphi 0, %s100
      %s115 = sphi 0, %s101
      %s121 = sphi 0, %s123
      %s124 = sphi 0, %s121
      %s125 = sphi 0, %s124
      %s141 = sphi 0, %s125
      %s147 = sphi 0, %s149
      %s150 = sphi 0, %s147
      %s151 = sphi 0, %s150
      %s167 = sphi 0, %s151
    $region4: #{tpu_custom_call.1} parent=1 // loop_header_branch
      %25 = sbr.rel (%p23) target = $region8
    $region5: #{tpu_custom_call.1} parent=1 // loop_body
      %s27 = ssub.s32 %s22, 1
      %s28 = ssub.s32 %s22, 2
      %s29 = sadd.s32 %s22, 1
      %s30 = ssub.s32 %s22, %s29
      %p31 = scmp.eq.s32.totalorder %s30, 0
      %s33 = sadd.s32 %s32, 1
      %s34 = scalar_select %p31, %s32, %s33
      %p37 = pneg %p31
      %p38 = scmp.eq.s32.totalorder %s22, 1
      %p39 = por %p37, %p38
      %p40 = scmp.ne.s32.totalorder %s32, %s35
      %p41 = scmp.eq.s32.totalorder %s22, 0
      %p42 = por %p40, %p41
      %p43 = scmp.ne.s32.totalorder %s32, %s35
      %p44 = scmp.eq.s32.totalorder %s27, 1
      %p45 = por %p43, %p44
      %p46 = scmp.ne.s32.totalorder %s35, %s36
      %p47 = scmp.eq.s32.totalorder %s27, 0
      %p48 = por %p46, %p47
      %p49 = scmp.ne.s32.totalorder %s35, %s36
      %p50 = scmp.eq.s32.totalorder %s28, 1
      %p51 = por %p49, %p50
      %p53 = scmp.ne.s32.totalorder %s36, %s52
      %p54 = scmp.eq.s32.totalorder %s28, 0
      %p55 = por %p53, %p54
      %s57 = sadd.s32 %s56, 1
      %p60 = scmp.eq.s32.totalorder %s22, 1
      %p61 = scmp.ne.s32.totalorder %s56, %s58
      %p62 = scmp.eq.s32.totalorder %s22, 0
      %p63 = por %p61, %p62
      %p64 = scmp.ne.s32.totalorder %s56, %s58
      %p65 = scmp.eq.s32.totalorder %s27, 1
      %p66 = por %p64, %p65
      %p67 = scmp.ne.s32.totalorder %s58, %s59
      %p68 = scmp.eq.s32.totalorder %s27, 0
      %p69 = por %p67, %p68
      %p70 = scmp.ne.s32.totalorder %s58, %s59
      %p71 = scmp.eq.s32.totalorder %s28, 1
      %p72 = por %p70, %p71
      %p74 = scmp.ne.s32.totalorder %s59, %s73
      %p75 = scmp.eq.s32.totalorder %s28, 0
      %p76 = por %p74, %p75
      %s78 = sadd.s32 %s77, 1
      %p81 = scmp.eq.s32.totalorder %s22, 1
      %p82 = scmp.ne.s32.totalorder %s77, %s79
      %p83 = scmp.eq.s32.totalorder %s22, 0
      %p84 = por %p82, %p83
      %p85 = scmp.ne.s32.totalorder %s77, %s79
      %p86 = scmp.eq.s32.totalorder %s27, 1
      %p87 = por %p85, %p86
      %p88 = scmp.ne.s32.totalorder %s79, %s80
      %p89 = scmp.eq.s32.totalorder %s27, 0
      %p90 = por %p88, %p89
      %p91 = scmp.ne.s32.totalorder %s79, %s80
      %p92 = scmp.eq.s32.totalorder %s28, 1
      %p93 = por %p91, %p92
      %p95 = scmp.ne.s32.totalorder %s80, %s94
      %p96 = scmp.eq.s32.totalorder %s28, 0
      %p97 = por %p95, %p96
      %s99 = sadd.s32 %s98, 1
      %p102 = scmp.eq.s32.totalorder %s22, 1
      %p103 = scmp.ne.s32.totalorder %s98, %s100
      %p104 = scmp.eq.s32.totalorder %s22, 0
      %p105 = por %p103, %p104
      %p106 = scmp.ne.s32.totalorder %s98, %s100
      %p107 = scmp.eq.s32.totalorder %s27, 1
      %p108 = por %p106, %p107
      %p109 = scmp.ne.s32.totalorder %s100, %s101
      %p110 = scmp.eq.s32.totalorder %s27, 0
      %p111 = por %p109, %p110
      %p112 = scmp.ne.s32.totalorder %s100, %s101
      %p113 = scmp.eq.s32.totalorder %s28, 1
      %p114 = por %p112, %p113
      %p116 = scmp.ne.s32.totalorder %s101, %s115
      %p117 = scmp.eq.s32.totalorder %s28, 0
      %p118 = por %p116, %p117
      %s119 = ssub.s32 %s22, %s29
      %p120 = scmp.eq.s32.totalorder %s119, 0
      %s122 = sadd.s32 %s121, 1
      %s123 = scalar_select %p120, %s121, %s122
      %p126 = pneg %p120
      %p127 = scmp.eq.s32.totalorder %s22, 1
      %p128 = por %p126, %p127
      %p129 = scmp.ne.s32.totalorder %s121, %s124
      %p130 = scmp.eq.s32.totalorder %s22, 0
      %p131 = por %p129, %p130
      %p132 = scmp.ne.s32.totalorder %s121, %s124
      %p133 = scmp.eq.s32.totalorder %s27, 1
      %p134 = por %p132, %p133
      %p135 = scmp.ne.s32.totalorder %s124, %s125
      %p136 = scmp.eq.s32.totalorder %s27, 0
      %p137 = por %p135, %p136
      %p138 = scmp.ne.s32.totalorder %s124, %s125
      %p139 = scmp.eq.s32.totalorder %s28, 1
      %p140 = por %p138, %p139
      %p142 = scmp.ne.s32.totalorder %s125, %s141
      %p143 = scmp.eq.s32.totalorder %s28, 0
      %p144 = por %p142, %p143
      %s145 = ssub.s32 %s22, %s29
      %p146 = scmp.eq.s32.totalorder %s145, 0
      %s148 = sadd.s32 %s147, 1
      %s149 = scalar_select %p146, %s147, %s148
      %p152 = pneg %p146
      %p153 = scmp.eq.s32.totalorder %s22, 1
      %p154 = por %p152, %p153
      %p155 = scmp.ne.s32.totalorder %s147, %s150
      %p156 = scmp.eq.s32.totalorder %s22, 0
      %p157 = por %p155, %p156
      %p158 = scmp.ne.s32.totalorder %s147, %s150
      %p159 = scmp.eq.s32.totalorder %s27, 1
      %p160 = por %p158, %p159
      %p161 = scmp.ne.s32.totalorder %s150, %s151
      %p162 = scmp.eq.s32.totalorder %s27, 0
      %p163 = por %p161, %p162
      %p164 = scmp.ne.s32.totalorder %s150, %s151
      %p165 = scmp.eq.s32.totalorder %s28, 1
      %p166 = por %p164, %p165
      %p168 = scmp.ne.s32.totalorder %s151, %s167
      %p169 = scmp.eq.s32.totalorder %s28, 0
      %p170 = por %p168, %p169
      %p171 = scmp.le.s32.totalorder 1, %s22
      %p172 = scmp.lt.s32.totalorder %s22, 3
      %p173 = pnand %p171, %p172
      %p174 = pneg %p173
      // Predicated region
      $region9: #{tpu_custom_call.1} parent=5 // pred_check
        _
      $region10: #{tpu_custom_call.1} parent=5 // pred_check_branch
        %176 = sbr.rel (%p173) target = $region12
      $region11: #{tpu_custom_call.1} parent=5 // pred_region
        %s177 = ssub.s32 %s22, 1
        // Predicated region
        $region13: #{tpu_custom_call.1} parent=11 // pred_check
          %p178 = pneg %p69
        $region14: #{tpu_custom_call.1} parent=11 // pred_check_branch
          %180 = sbr.rel (%p178) target = $region16
        $region15: #{tpu_custom_call.1} parent=11 // pred_region
          %s182 = ssub.s32 1536, 1536
          %183 = vsyncadd [#allocation6], %s182
          %s184 = sshll.u32 [#allocation5], 4
          %s185 = int_to_ptr.vmem [resolvable:$true] %s184
          %190 = dma.hbm_to_vmem [thread:$0]  %s1, 1536, %s185, [#allocation6], 64, 64, 4
        $region16: #{tpu_custom_call.1} parent=11 // pred_fallthru
          _
        // Predicated region
        $region17: #{tpu_custom_call.1} parent=11 // pred_check
          %p191 = pneg %p90
        $region18: #{tpu_custom_call.1} parent=11 // pred_check_branch
          %193 = sbr.rel (%p191) target = $region20
        $region19: #{tpu_custom_call.1} parent=11 // pred_region
          %s195 = ssub.s32 1536, 1536
          %196 = vsyncadd [#allocation6], %s195
          %s197 = sshll.u32 [#allocation7], 4
          %s198 = int_to_ptr.vmem [resolvable:$true] %s197
          %203 = dma.hbm_to_vmem [thread:$0]  %s2, 1536, %s198, [#allocation6], 64, 64, 4
        $region20: #{tpu_custom_call.1} parent=11 // pred_fallthru
          _
        // Predicated region
        $region21: #{tpu_custom_call.1} parent=11 // pred_check
          %p204 = pneg %p111
        $region22: #{tpu_custom_call.1} parent=11 // pred_check_branch
          %206 = sbr.rel (%p204) target = $region24
        $region23: #{tpu_custom_call.1} parent=11 // pred_region
          _
        $region24: #{tpu_custom_call.1} parent=11 // pred_fallthru
          _
      $region12: #{tpu_custom_call.1} parent=5 // pred_fallthru
        _
      %p207 = scmp.lt.s32.totalorder %s22, 2
      // Predicated region
      $region25: #{tpu_custom_call.1} parent=5 // pred_check
        %p208 = pneg %p207
      $region26: #{tpu_custom_call.1} parent=5 // pred_check_branch
        %210 = sbr.rel (%p208) target = $region28
      $region27: #{tpu_custom_call.1} parent=5 // pred_region
        // Predicated region
        $region29: #{tpu_custom_call.1} parent=27 // pred_check
          %p211 = pneg %p42
        $region30: #{tpu_custom_call.1} parent=27 // pred_check_branch
          %213 = sbr.rel (%p211) target = $region32
        $region31: #{tpu_custom_call.1} parent=27 // pred_region
          %s214 = sand.u32 %s32, 1
          %s215 = scalar_lea.sflag [#allocation3], %s214
          %s216 = sand.u32 %s32, 1
          %s217 = smul.addr %s216, 8
          %s218 = scalar_lea.vmem [#allocation2], %s217
          %s220 = ssub.s32 128, 128
          %221 = vsyncadd %s215, %s220
          %s222 = smul.addr %s22, 128
          %s223 = scalar_lea.hbm %s0, %s222
          %s225 = sshll.u32 %s218, 4
          %s226 = int_to_ptr.vmem [resolvable:$true] %s225
          %228 = dma.hbm_to_vmem [thread:$0]  %s223, 128, %s226, %s215
        $region32: #{tpu_custom_call.1} parent=27 // pred_fallthru
          _
      $region28: #{tpu_custom_call.1} parent=5 // pred_fallthru
        _
      %p229 = scmp.le.s32.totalorder 1, %s22
      %p230 = scmp.lt.s32.totalorder %s22, 3
      %p231 = pnand %p229, %p230
      %p232 = pneg %p231
      // Predicated region
      $region33: #{tpu_custom_call.1} parent=5 // pred_check
        _
      $region34: #{tpu_custom_call.1} parent=5 // pred_check_branch
        %234 = sbr.rel (%p231) target = $region36
      $region35: #{tpu_custom_call.1} parent=5 // pred_region
        %s235 = ssub.s32 %s22, 1
        %s236 = sand.u32 %s35, 1
        %s237 = scalar_lea.sflag [#allocation3], %s236
        %s238 = sand.u32 %s35, 1
        %s239 = smul.addr %s238, 8
        %s240 = scalar_lea.vmem [#allocation2], %s239
        // Predicated region
        $region37: #{tpu_custom_call.1} parent=35 // pred_check
          %p241 = pneg %p48
        $region38: #{tpu_custom_call.1} parent=35 // pred_check_branch
          %243 = sbr.rel (%p241) target = $region40
        $region39: #{tpu_custom_call.1} parent=35 // pred_region
          %244 = dma.done %s237, 128
        $region40: #{tpu_custom_call.1} parent=35 // pred_fallthru
          _
        // Predicated region
        $region41: #{tpu_custom_call.1} parent=35 // pred_check
          %p245 = pneg %p69
        $region42: #{tpu_custom_call.1} parent=35 // pred_check_branch
          %247 = sbr.rel (%p245) target = $region44
        $region43: #{tpu_custom_call.1} parent=35 // pred_region
          %248 = dma.done [#allocation6], 1536
        $region44: #{tpu_custom_call.1} parent=35 // pred_fallthru
          _
        // Predicated region
        $region45: #{tpu_custom_call.1} parent=35 // pred_check
          %p249 = pneg %p90
        $region46: #{tpu_custom_call.1} parent=35 // pred_check_branch
          %251 = sbr.rel (%p249) target = $region48
        $region47: #{tpu_custom_call.1} parent=35 // pred_region
          %252 = dma.done [#allocation6], 1536
        $region48: #{tpu_custom_call.1} parent=35 // pred_fallthru
          _
        %s253 = sand.u32 %s35, 1
        %s254 = scalar_lea.sflag [#allocation3], %s253
        %s255 = sand.u32 %s35, 1
        %s256 = smul.addr %s255, 8
        %s257 = scalar_lea.vmem [#allocation2], %s256
        %p258 = pneg %p48
        %p259 = pneg %p45
        %p260 = pneg %p69
        %p261 = pneg %p66
        %p262 = pneg %p90
        %p263 = pneg %p87
        %p264 = pneg %p111
        %p265 = pneg %p108
        %p266 = pneg %p137
        %p267 = pneg %p134
        %s268 = sand.u32 %s124, 1
        %s269 = scalar_lea.sflag [#allocation4], %s268
        %s270 = sand.u32 %s124, 1
        %s271 = smul.addr %s270, 8
        %s272 = scalar_lea.vmem [#allocation8], %s271
        %p273 = pneg %p163
        %p274 = pneg %p160
        %s275 = sand.u32 %s150, 1
        %s276 = scalar_lea.sflag [#allocation10], %s275
        %s277 = sand.u32 %s150, 1
        %s278 = smul.addr %s277, 8
        %s279 = scalar_lea.vmem [#allocation9], %s278
        %v281 = vld [vmem:[%s240] sm:$0xff]
        %283 = vrot.lane.b32.xlu0 %v281, 64
        %v284 = vpop.permute.xlu0 %283
        %v286 = vmax.f32 %v281, %v284
        %vm287 = vcmask 1048064
        %288 = vrot.lane.b32.xlu0 %v286, 64
        %v289 = vpop.permute.xlu0 %288
        %v290 = vsel %vm287, %v289, %v286
        %291 = vrot.lane.b32.xlu0 %v290, 64
        %v292 = vpop.permute.xlu0 %291
        %v293 = vsel %vm287, %v292, %v286
        %295 = vrot.lane.b32.xlu0 %v293, 124
        %v296 = vpop.permute.xlu0 %295
        %v298 = vmax.f32 %v286, %v296
        %vm299 = vcmask 523264
        %300 = vst.msk [vmem:[%s279] sm:$0xff] %vm299, %v298
        %v301 = vlaneseq
        %v302 = vshrl.u32 %v301, 7
        %vm303 = vcmp.lt.s32.totalorder %v302, 0
        %v304 = vsub.s32 0, %v302
        %v305 = vsel %vm303, %v304, %v302
        %v306 = vshrl.u32 %v305, 3
        %v307 = vand.u32 %v305, 7
        %v308 = vsub.s32 0, %v307
        %v309 = vsel %vm303, %v308, %v307
        %vm310 = vcmp.ne.s32.totalorder %v309, 0
        %vm311 = vcmp.lt.s32.totalorder %v309, 0
        %vm312 = vmand %vm311, %vm310
        %v313 = vadd.s32 %v309, 8
        %v314 = vsel %vm312, %v313, %v309
        %vm315 = vcmp.gt.s32.totalorder %v314, 0
        %v316 = vsel %vm315, 1, 0
        %v317 = vcvt.s32.f32 %v316
        %vm318 = vcmp.lt.s32.totalorder %v314, 7
        %v319 = vsel %vm318, 1, 0
        %v320 = vcvt.s32.f32 %v319
        %v321 = vld [vmem:[%s3] sm:$0xf]
        %v322 = vrot.slane %v298, 7
        %v323 = vmul.f32 %v322, %v317
        %v324 = vrot.slane %v298, 1
        %v325 = vmul.f32 %v324, %v320
        %v326 = vpack.c.bf16 %v323, %v323
        %v327 = vld [vmem:[#allocation5] sm:$0xf]
        %v328 = vld [vmem:[#allocation5 + $0x4] sm:$0xf]
        %v329 = vld [vmem:[#allocation5 + $0x8] sm:$0xf]
        %v330 = vld [vmem:[#allocation5 + $0xc] sm:$0xf]
        %v331 = vld [vmem:[#allocation5 + $0x10] sm:$0xf]
        %v332 = vld [vmem:[#allocation5 + $0x14] sm:$0xf]
        %v333 = vld [vmem:[#allocation5 + $0x18] sm:$0xf]
        %v334 = vld [vmem:[#allocation5 + $0x1c] sm:$0xf]
        %v335 = vpack.c.bf16 %v298, %v298
        %s336 = scalar_lea.vmem [#allocation5], 32
        %v337 = vld [vmem:[%s336] sm:$0xf]
        %v338 = vld [vmem:[%s336 + $0x4] sm:$0xf]
        %v339 = vld [vmem:[%s336 + $0x8] sm:$0xf]
        %v340 = vld [vmem:[%s336 + $0xc] sm:$0xf]
        %v341 = vld [vmem:[%s336 + $0x10] sm:$0xf]
        %v342 = vld [vmem:[%s336 + $0x14] sm:$0xf]
        %v343 = vld [vmem:[%s336 + $0x18] sm:$0xf]
        %v344 = vld [vmem:[%s336 + $0x1c] sm:$0xf]
        %v353 = vunpack.c.l.b16 %v337
        %v354 = vunpack.c.l.b16 %v338
        %v355 = vunpack.c.l.b16 %v339
        %v356 = vunpack.c.l.b16 %v340
        %v357 = vunpack.c.l.b16 %v341
        %v358 = vunpack.c.l.b16 %v342
        %v359 = vunpack.c.l.b16 %v343
        %v360 = vunpack.c.l.b16 %v344
        %v361 = vpack.c.b16 %v354, %v353
        %v362 = vpack.c.b16 %v356, %v355
        %v363 = vpack.c.b16 %v358, %v357
        %v364 = vpack.c.b16 %v360, %v359
        %v370 = vsel %vm299, %v335, 0
        %372 = vmatprep.subr.bf16.mxu0 0
        %373 = vmatpush1.bf16.msra.mxu0 0
        %374 = vmatprep.subr.bf16.mxu0 0
        %375 = vmatpush1.bf16.msra.mxu0 0
        %376 = vmatprep.subr.bf16.mxu0 0
        %377 = vmatpush1.bf16.msra.mxu0 0
        %378 = vmatprep.subr.bf16.mxu0 0
        %379 = vmatpush1.bf16.msra.mxu0 0
        %380 = vmatprep.subr.bf16.mxu0 0
        %381 = vmatpush1.bf16.msra.mxu0 %v364
        %382 = vmatprep.subr.bf16.mxu0 0
        %383 = vmatpush1.bf16.msra.mxu0 %v363
        %384 = vmatprep.subr.bf16.mxu0 0
        %385 = vmatpush1.bf16.msra.mxu0 %v362
        %386 = vmatprep.subr.bf16.mxu0 0
        %387 = vmatpush1.bf16.msra.mxu0 %v361
        %388 = vmatprep.subr.bf16.mxu0 0
        %389 = vmatpush2.bf16.msra.mxu0 0
        %390 = vmatprep.subr.bf16.mxu0 0
        %391 = vmatpush2.bf16.msra.mxu0 0
        %392 = vmatprep.subr.bf16.mxu0 0
        %393 = vmatpush2.bf16.msra.mxu0 0
        %394 = vmatprep.subr.bf16.mxu0 0
        %395 = vmatpush2.bf16.msra.mxu0 0
        %396 = vmatprep.subr.bf16.mxu0 0
        %397 = vmatpush2.bf16.msra.mxu0 0
        %398 = vmatprep.subr.bf16.mxu0 0
        %399 = vmatpush2.bf16.msra.mxu0 0
        %400 = vmatprep.subr.bf16.mxu0 0
        %401 = vmatpush2.bf16.msra.mxu0 0
        %402 = vmatprep.subr.bf16.mxu0 0
        %403 = vmatpush2.bf16.msra.mxu0 0
        %404 = vmatprep.mubr.bf16.mxu0 0
        %405 = vmatmul.mubr.bf16.gmra.mxu0 %v370
        %v406 = vpop.f32.mrf.mxu0
        %v407 = vadd.f32 0.0, %v406
        %v408 = vpop.f32.mrf.mxu0
        %v409 = vpop.f32.mrf.mxu0
        %v410 = vpop.f32.mrf.mxu0
        %411 = vdwg.mxu0
        %v420 = vunpack.c.l.b16 %v327
        %v421 = vunpack.c.l.b16 %v328
        %v422 = vunpack.c.l.b16 %v329
        %v423 = vunpack.c.l.b16 %v330
        %v424 = vunpack.c.l.b16 %v331
        %v425 = vunpack.c.l.b16 %v332
        %v426 = vunpack.c.l.b16 %v333
        %v427 = vunpack.c.l.b16 %v334
        %v428 = vpack.c.b16 %v421, %v420
        %v429 = vpack.c.b16 %v423, %v422
        %v430 = vpack.c.b16 %v425, %v424
        %v431 = vpack.c.b16 %v427, %v426
        %v437 = vsel %vm299, %v326, 0
        %439 = vmatprep.subr.bf16.mxu0 0
        %440 = vmatpush1.bf16.msra.mxu0 0
        %441 = vmatprep.subr.bf16.mxu0 0
        %442 = vmatpush1.bf16.msra.mxu0 0
        %443 = vmatprep.subr.bf16.mxu0 0
        %444 = vmatpush1.bf16.msra.mxu0 0
        %445 = vmatprep.subr.bf16.mxu0 0
        %446 = vmatpush1.bf16.msra.mxu0 0
        %447 = vmatprep.subr.bf16.mxu0 0
        %448 = vmatpush1.bf16.msra.mxu0 %v431
        %449 = vmatprep.subr.bf16.mxu0 0
        %450 = vmatpush1.bf16.msra.mxu0 %v430
        %451 = vmatprep.subr.bf16.mxu0 0
        %452 = vmatpush1.bf16.msra.mxu0 %v429
        %453 = vmatprep.subr.bf16.mxu0 0
        %454 = vmatpush1.bf16.msra.mxu0 %v428
        %455 = vmatprep.subr.bf16.mxu0 0
        %456 = vmatpush2.bf16.msra.mxu0 0
        %457 = vmatprep.subr.bf16.mxu0 0
        %458 = vmatpush2.bf16.msra.mxu0 0
        %459 = vmatprep.subr.bf16.mxu0 0
        %460 = vmatpush2.bf16.msra.mxu0 0
        %461 = vmatprep.subr.bf16.mxu0 0
        %462 = vmatpush2.bf16.msra.mxu0 0
        %463 = vmatprep.subr.bf16.mxu0 0
        %464 = vmatpush2.bf16.msra.mxu0 0
        %465 = vmatprep.subr.bf16.mxu0 0
        %466 = vmatpush2.bf16.msra.mxu0 0
        %467 = vmatprep.subr.bf16.mxu0 0
        %468 = vmatpush2.bf16.msra.mxu0 0
        %469 = vmatprep.subr.bf16.mxu0 0
        %470 = vmatpush2.bf16.msra.mxu0 0
        %471 = vmatprep.mubr.bf16.mxu0 0
        %472 = vmatmul.mubr.bf16.gmra.mxu0 %v437
        %v473 = vpop.f32.mrf.mxu0
        %v474 = vadd.f32 %v407, %v473
        %v475 = vpop.f32.mrf.mxu0
        %v476 = vpop.f32.mrf.mxu0
        %v477 = vpop.f32.mrf.mxu0
        %478 = vdwg.mxu0
        %v479 = vpack.c.bf16 %v325, %v325
        %s480 = scalar_lea.vmem [#allocation5], 64
        %v481 = vld [vmem:[%s480] sm:$0xf]
        %v482 = vld [vmem:[%s480 + $0x4] sm:$0xf]
        %v483 = vld [vmem:[%s480 + $0x8] sm:$0xf]
        %v484 = vld [vmem:[%s480 + $0xc] sm:$0xf]
        %v485 = vld [vmem:[%s480 + $0x10] sm:$0xf]
        %v486 = vld [vmem:[%s480 + $0x14] sm:$0xf]
        %v487 = vld [vmem:[%s480 + $0x18] sm:$0xf]
        %v488 = vld [vmem:[%s480 + $0x1c] sm:$0xf]
        %v497 = vunpack.c.l.b16 %v481
        %v498 = vunpack.c.l.b16 %v482
        %v499 = vunpack.c.l.b16 %v483
        %v500 = vunpack.c.l.b16 %v484
        %v501 = vunpack.c.l.b16 %v485
        %v502 = vunpack.c.l.b16 %v486
        %v503 = vunpack.c.l.b16 %v487
        %v504 = vunpack.c.l.b16 %v488
        %v505 = vpack.c.b16 %v498, %v497
        %v506 = vpack.c.b16 %v500, %v499
        %v507 = vpack.c.b16 %v502, %v501
        %v508 = vpack.c.b16 %v504, %v503
        %v514 = vsel %vm299, %v479, 0
        %516 = vmatprep.subr.bf16.mxu0 0
        %517 = vmatpush1.bf16.msra.mxu0 0
        %518 = vmatprep.subr.bf16.mxu0 0
        %519 = vmatpush1.bf16.msra.mxu0 0
        %520 = vmatprep.subr.bf16.mxu0 0
        %521 = vmatpush1.bf16.msra.mxu0 0
        %522 = vmatprep.subr.bf16.mxu0 0
        %523 = vmatpush1.bf16.msra.mxu0 0
        %524 = vmatprep.subr.bf16.mxu0 0
        %525 = vmatpush1.bf16.msra.mxu0 %v508
        %526 = vmatprep.subr.bf16.mxu0 0
        %527 = vmatpush1.bf16.msra.mxu0 %v507
        %528 = vmatprep.subr.bf16.mxu0 0
        %529 = vmatpush1.bf16.msra.mxu0 %v506
        %530 = vmatprep.subr.bf16.mxu0 0
        %531 = vmatpush1.bf16.msra.mxu0 %v505
        %532 = vmatprep.subr.bf16.mxu0 0
        %533 = vmatpush2.bf16.msra.mxu0 0
        %534 = vmatprep.subr.bf16.mxu0 0
        %535 = vmatpush2.bf16.msra.mxu0 0
        %536 = vmatprep.subr.bf16.mxu0 0
        %537 = vmatpush2.bf16.msra.mxu0 0
        %538 = vmatprep.subr.bf16.mxu0 0
        %539 = vmatpush2.bf16.msra.mxu0 0
        %540 = vmatprep.subr.bf16.mxu0 0
        %541 = vmatpush2.bf16.msra.mxu0 0
        %542 = vmatprep.subr.bf16.mxu0 0
        %543 = vmatpush2.bf16.msra.mxu0 0
        %544 = vmatprep.subr.bf16.mxu0 0
        %545 = vmatpush2.bf16.msra.mxu0 0
        %546 = vmatprep.subr.bf16.mxu0 0
        %547 = vmatpush2.bf16.msra.mxu0 0
        %548 = vmatprep.mubr.bf16.mxu0 0
        %549 = vmatmul.mubr.bf16.gmra.mxu0 %v514
        %v550 = vpop.f32.mrf.mxu0
        %v551 = vadd.f32 0.0, %v550
        %v552 = vpop.f32.mrf.mxu0
        %v553 = vpop.f32.mrf.mxu0
        %v554 = vpop.f32.mrf.mxu0
        %555 = vdwg.mxu0
        %v556 = vadd.f32 %v474, %v551
        %v557 = vlaneseq
        %v558 = vshrl.u32 %v557, 7
        %v559 = vsub.s32 0, %v558
        %v560 = vrot.slane %v321, %v559
        %v561 = vmul.f32 %v556, %v560
        %v562 = vlaneseq
        %v563 = vshrl.u32 %v562, 7
        %v564 = vsub.s32 1, %v563
        %v565 = vrot.slane %v321, %v564
        %v566 = vadd.f32 %v561, %v565
        %vm567 = vcmp.gt.f32.partialorder %v566, 0.0
        %v568 = vmul.f32 %v566, 0.01
        %v569 = vsel %vm567, %v566, %v568
        %v570 = vrot.slane %v569, 7
        %v571 = vmul.f32 %v570, %v317
        %v572 = vrot.slane %v569, 1
        %v573 = vmul.f32 %v572, %v320
        %v574 = vpack.c.bf16 %v571, %v571
        %v575 = vld [vmem:[#allocation7] sm:$0xf]
        %v576 = vld [vmem:[#allocation7 + $0x4] sm:$0xf]
        %v577 = vld [vmem:[#allocation7 + $0x8] sm:$0xf]
        %v578 = vld [vmem:[#allocation7 + $0xc] sm:$0xf]
        %v579 = vld [vmem:[#allocation7 + $0x10] sm:$0xf]
        %v580 = vld [vmem:[#allocation7 + $0x14] sm:$0xf]
        %v581 = vld [vmem:[#allocation7 + $0x18] sm:$0xf]
        %v582 = vld [vmem:[#allocation7 + $0x1c] sm:$0xf]
        %v583 = vpack.c.bf16 %v569, %v569
        %s584 = scalar_lea.vmem [#allocation7], 32
        %v585 = vld [vmem:[%s584] sm:$0xf]
        %v586 = vld [vmem:[%s584 + $0x4] sm:$0xf]
        %v587 = vld [vmem:[%s584 + $0x8] sm:$0xf]
        %v588 = vld [vmem:[%s584 + $0xc] sm:$0xf]
        %v589 = vld [vmem:[%s584 + $0x10] sm:$0xf]
        %v590 = vld [vmem:[%s584 + $0x14] sm:$0xf]
        %v591 = vld [vmem:[%s584 + $0x18] sm:$0xf]
        %v592 = vld [vmem:[%s584 + $0x1c] sm:$0xf]
        %v601 = vunpack.c.l.b16 %v585
        %v602 = vunpack.c.l.b16 %v586
        %v603 = vunpack.c.l.b16 %v587
        %v604 = vunpack.c.l.b16 %v588
        %v605 = vunpack.c.l.b16 %v589
        %v606 = vunpack.c.l.b16 %v590
        %v607 = vunpack.c.l.b16 %v591
        %v608 = vunpack.c.l.b16 %v592
        %v609 = vpack.c.b16 %v602, %v601
        %v610 = vpack.c.b16 %v604, %v603
        %v611 = vpack.c.b16 %v606, %v605
        %v612 = vpack.c.b16 %v608, %v607
        %v618 = vsel %vm299, %v583, 0
        %620 = vmatprep.subr.bf16.mxu0 0
        %621 = vmatpush1.bf16.msra.mxu0 0
        %622 = vmatprep.subr.bf16.mxu0 0
        %623 = vmatpush1.bf16.msra.mxu0 0
        %624 = vmatprep.subr.bf16.mxu0 0
        %625 = vmatpush1.bf16.msra.mxu0 0
        %626 = vmatprep.subr.bf16.mxu0 0
        %627 = vmatpush1.bf16.msra.mxu0 0
        %628 = vmatprep.subr.bf16.mxu0 0
        %629 = vmatpush1.bf16.msra.mxu0 %v612
        %630 = vmatprep.subr.bf16.mxu0 0
        %631 = vmatpush1.bf16.msra.mxu0 %v611
        %632 = vmatprep.subr.bf16.mxu0 0
        %633 = vmatpush1.bf16.msra.mxu0 %v610
        %634 = vmatprep.subr.bf16.mxu0 0
        %635 = vmatpush1.bf16.msra.mxu0 %v609
        %636 = vmatprep.subr.bf16.mxu0 0
        %637 = vmatpush2.bf16.msra.mxu0 0
        %638 = vmatprep.subr.bf16.mxu0 0
        %639 = vmatpush2.bf16.msra.mxu0 0
        %640 = vmatprep.subr.bf16.mxu0 0
        %641 = vmatpush2.bf16.msra.mxu0 0
        %642 = vmatprep.subr.bf16.mxu0 0
        %643 = vmatpush2.bf16.msra.mxu0 0
        %644 = vmatprep.subr.bf16.mxu0 0
        %645 = vmatpush2.bf16.msra.mxu0 0
        %646 = vmatprep.subr.bf16.mxu0 0
        %647 = vmatpush2.bf16.msra.mxu0 0
        %648 = vmatprep.subr.bf16.mxu0 0
        %649 = vmatpush2.bf16.msra.mxu0 0
        %650 = vmatprep.subr.bf16.mxu0 0
        %651 = vmatpush2.bf16.msra.mxu0 0
        %652 = vmatprep.mubr.bf16.mxu0 0
        %653 = vmatmul.mubr.bf16.gmra.mxu0 %v618
        %v654 = vpop.f32.mrf.mxu0
        %v655 = vadd.f32 0.0, %v654
        %v656 = vpop.f32.mrf.mxu0
        %v657 = vpop.f32.mrf.mxu0
        %v658 = vpop.f32.mrf.mxu0
        %659 = vdwg.mxu0
        %v668 = vunpack.c.l.b16 %v575
        %v669 = vunpack.c.l.b16 %v576
        %v670 = vunpack.c.l.b16 %v577
        %v671 = vunpack.c.l.b16 %v578
        %v672 = vunpack.c.l.b16 %v579
        %v673 = vunpack.c.l.b16 %v580
        %v674 = vunpack.c.l.b16 %v581
        %v675 = vunpack.c.l.b16 %v582
        %v676 = vpack.c.b16 %v669, %v668
        %v677 = vpack.c.b16 %v671, %v670
        %v678 = vpack.c.b16 %v673, %v672
        %v679 = vpack.c.b16 %v675, %v674
        %v685 = vsel %vm299, %v574, 0
        %687 = vmatprep.subr.bf16.mxu0 0
        %688 = vmatpush1.bf16.msra.mxu0 0
        %689 = vmatprep.subr.bf16.mxu0 0
        %690 = vmatpush1.bf16.msra.mxu0 0
        %691 = vmatprep.subr.bf16.mxu0 0
        %692 = vmatpush1.bf16.msra.mxu0 0
        %693 = vmatprep.subr.bf16.mxu0 0
        %694 = vmatpush1.bf16.msra.mxu0 0
        %695 = vmatprep.subr.bf16.mxu0 0
        %696 = vmatpush1.bf16.msra.mxu0 %v679
        %697 = vmatprep.subr.bf16.mxu0 0
        %698 = vmatpush1.bf16.msra.mxu0 %v678
        %699 = vmatprep.subr.bf16.mxu0 0
        %700 = vmatpush1.bf16.msra.mxu0 %v677
        %701 = vmatprep.subr.bf16.mxu0 0
        %702 = vmatpush1.bf16.msra.mxu0 %v676
        %703 = vmatprep.subr.bf16.mxu0 0
        %704 = vmatpush2.bf16.msra.mxu0 0
        %705 = vmatprep.subr.bf16.mxu0 0
        %706 = vmatpush2.bf16.msra.mxu0 0
        %707 = vmatprep.subr.bf16.mxu0 0
        %708 = vmatpush2.bf16.msra.mxu0 0
        %709 = vmatprep.subr.bf16.mxu0 0
        %710 = vmatpush2.bf16.msra.mxu0 0
        %711 = vmatprep.subr.bf16.mxu0 0
        %712 = vmatpush2.bf16.msra.mxu0 0
        %713 = vmatprep.subr.bf16.mxu0 0
        %714 = vmatpush2.bf16.msra.mxu0 0
        %715 = vmatprep.subr.bf16.mxu0 0
        %716 = vmatpush2.bf16.msra.mxu0 0
        %717 = vmatprep.subr.bf16.mxu0 0
        %718 = vmatpush2.bf16.msra.mxu0 0
        %719 = vmatprep.mubr.bf16.mxu0 0
        %720 = vmatmul.mubr.bf16.gmra.mxu0 %v685
        %v721 = vpop.f32.mrf.mxu0
        %v722 = vadd.f32 %v655, %v721
        %v723 = vpop.f32.mrf.mxu0
        %v724 = vpop.f32.mrf.mxu0
        %v725 = vpop.f32.mrf.mxu0
        %726 = vdwg.mxu0
        %v727 = vpack.c.bf16 %v573, %v573
        %s728 = scalar_lea.vmem [#allocation7], 64
        %v729 = vld [vmem:[%s728] sm:$0xf]
        %v730 = vld [vmem:[%s728 + $0x4] sm:$0xf]
        %v731 = vld [vmem:[%s728 + $0x8] sm:$0xf]
        %v732 = vld [vmem:[%s728 + $0xc] sm:$0xf]
        %v733 = vld [vmem:[%s728 + $0x10] sm:$0xf]
        %v734 = vld [vmem:[%s728 + $0x14] sm:$0xf]
        %v735 = vld [vmem:[%s728 + $0x18] sm:$0xf]
        %v736 = vld [vmem:[%s728 + $0x1c] sm:$0xf]
        %v745 = vunpack.c.l.b16 %v729
        %v746 = vunpack.c.l.b16 %v730
        %v747 = vunpack.c.l.b16 %v731
        %v748 = vunpack.c.l.b16 %v732
        %v749 = vunpack.c.l.b16 %v733
        %v750 = vunpack.c.l.b16 %v734
        %v751 = vunpack.c.l.b16 %v735
        %v752 = vunpack.c.l.b16 %v736
        %v753 = vpack.c.b16 %v746, %v745
        %v754 = vpack.c.b16 %v748, %v747
        %v755 = vpack.c.b16 %v750, %v749
        %v756 = vpack.c.b16 %v752, %v751
        %v762 = vsel %vm299, %v727, 0
        %764 = vmatprep.subr.bf16.mxu0 0
        %765 = vmatpush1.bf16.msra.mxu0 0
        %766 = vmatprep.subr.bf16.mxu0 0
        %767 = vmatpush1.bf16.msra.mxu0 0
        %768 = vmatprep.subr.bf16.mxu0 0
        %769 = vmatpush1.bf16.msra.mxu0 0
        %770 = vmatprep.subr.bf16.mxu0 0
        %771 = vmatpush1.bf16.msra.mxu0 0
        %772 = vmatprep.subr.bf16.mxu0 0
        %773 = vmatpush1.bf16.msra.mxu0 %v756
        %774 = vmatprep.subr.bf16.mxu0 0
        %775 = vmatpush1.bf16.msra.mxu0 %v755
        %776 = vmatprep.subr.bf16.mxu0 0
        %777 = vmatpush1.bf16.msra.mxu0 %v754
        %778 = vmatprep.subr.bf16.mxu0 0
        %779 = vmatpush1.bf16.msra.mxu0 %v753
        %780 = vmatprep.subr.bf16.mxu0 0
        %781 = vmatpush2.bf16.msra.mxu0 0
        %782 = vmatprep.subr.bf16.mxu0 0
        %783 = vmatpush2.bf16.msra.mxu0 0
        %784 = vmatprep.subr.bf16.mxu0 0
        %785 = vmatpush2.bf16.msra.mxu0 0
        %786 = vmatprep.subr.bf16.mxu0 0
        %787 = vmatpush2.bf16.msra.mxu0 0
        %788 = vmatprep.subr.bf16.mxu0 0
        %789 = vmatpush2.bf16.msra.mxu0 0
        %790 = vmatprep.subr.bf16.mxu0 0
        %791 = vmatpush2.bf16.msra.mxu0 0
        %792 = vmatprep.subr.bf16.mxu0 0
        %793 = vmatpush2.bf16.msra.mxu0 0
        %794 = vmatprep.subr.bf16.mxu0 0
        %795 = vmatpush2.bf16.msra.mxu0 0
        %796 = vmatprep.mubr.bf16.mxu0 0
        %797 = vmatmul.mubr.bf16.gmra.mxu0 %v762
        %v798 = vpop.f32.mrf.mxu0
        %v799 = vadd.f32 0.0, %v798
        %v800 = vpop.f32.mrf.mxu0
        %v801 = vpop.f32.mrf.mxu0
        %v802 = vpop.f32.mrf.mxu0
        %803 = vdwg.mxu0
        %v804 = vadd.f32 %v722, %v799
        %v805 = vlaneseq
        %v806 = vshrl.u32 %v805, 7
        %v807 = vsub.s32 2, %v806
        %v808 = vrot.slane %v321, %v807
        %v809 = vmul.f32 %v804, %v808
        %v810 = vlaneseq
        %v811 = vshrl.u32 %v810, 7
        %v812 = vsub.s32 3, %v811
        %v813 = vrot.slane %v321, %v812
        %v814 = vadd.f32 %v809, %v813
        %vm815 = vcmp.gt.f32.partialorder %v814, 0.0
        %v816 = vmul.f32 %v814, 0.01
        %v817 = vsel %vm815, %v814, %v816
        %818 = vst.msk [vmem:[%s272] sm:$0xff] %vm299, %v817
        %s819 = sand.u32 %s124, 1
        %s820 = scalar_lea.sflag [#allocation4], %s819
        %s821 = sand.u32 %s124, 1
        %s822 = smul.addr %s821, 8
        %s823 = scalar_lea.vmem [#allocation8], %s822
        %s824 = sand.u32 %s150, 1
        %s825 = scalar_lea.sflag [#allocation10], %s824
        %s826 = sand.u32 %s150, 1
        %s827 = smul.addr %s826, 8
        %s828 = scalar_lea.vmem [#allocation9], %s827
        // Predicated region
        $region49: #{tpu_custom_call.1} parent=35 // pred_check
          %p829 = pneg %p134
        $region50: #{tpu_custom_call.1} parent=35 // pred_check_branch
          %831 = sbr.rel (%p829) target = $region52
        $region51: #{tpu_custom_call.1} parent=35 // pred_region
          %s833 = ssub.s32 128, 128
          %834 = vsyncadd %s820, %s833
          %s835 = smul.addr %s27, 128
          %s836 = scalar_lea.hbm %s4, %s835
          %s838 = sshll.u32 %s823, 4
          %s839 = int_to_ptr.vmem [resolvable:$true] %s838
          %841 = dma.vmem_to_hbm [thread:$0]  %s839, 128, %s836, %s820
        $region52: #{tpu_custom_call.1} parent=35 // pred_fallthru
          _
        // Predicated region
        $region53: #{tpu_custom_call.1} parent=35 // pred_check
          %p842 = pneg %p160
        $region54: #{tpu_custom_call.1} parent=35 // pred_check_branch
          %844 = sbr.rel (%p842) target = $region56
        $region55: #{tpu_custom_call.1} parent=35 // pred_region
          %s846 = ssub.s32 128, 128
          %847 = vsyncadd %s825, %s846
          %s848 = smul.addr %s27, 128
          %s849 = scalar_lea.hbm %s5, %s848
          %s851 = sshll.u32 %s828, 4
          %s852 = int_to_ptr.vmem [resolvable:$true] %s851
          %854 = dma.vmem_to_hbm [thread:$0]  %s852, 128, %s849, %s825
        $region56: #{tpu_custom_call.1} parent=35 // pred_fallthru
          _
      $region36: #{tpu_custom_call.1} parent=5 // pred_fallthru
        _
      %p855 = scmp.le.s32.totalorder 2, %s22
      // Predicated region
      $region57: #{tpu_custom_call.1} parent=5 // pred_check
        %p856 = pneg %p855
      $region58: #{tpu_custom_call.1} parent=5 // pred_check_branch
        %858 = sbr.rel (%p856) target = $region60
      $region59: #{tpu_custom_call.1} parent=5 // pred_region
        %s859 = ssub.s32 %s22, 2
        // Predicated region
        $region61: #{tpu_custom_call.1} parent=59 // pred_check
          %p860 = pneg %p140
        $region62: #{tpu_custom_call.1} parent=59 // pred_check_branch
          %862 = sbr.rel (%p860) target = $region64
        $region63: #{tpu_custom_call.1} parent=59 // pred_region
          %s863 = sand.u32 %s125, 1
          %s864 = scalar_lea.sflag [#allocation4], %s863
          %s865 = sand.u32 %s125, 1
          %s866 = smul.addr %s865, 8
          %s867 = scalar_lea.vmem [#allocation8], %s866
          %868 = dma.done %s864, 128
        $region64: #{tpu_custom_call.1} parent=59 // pred_fallthru
          _
        // Predicated region
        $region65: #{tpu_custom_call.1} parent=59 // pred_check
          %p869 = pneg %p166
        $region66: #{tpu_custom_call.1} parent=59 // pred_check_branch
          %871 = sbr.rel (%p869) target = $region68
        $region67: #{tpu_custom_call.1} parent=59 // pred_region
          %s872 = sand.u32 %s151, 1
          %s873 = scalar_lea.sflag [#allocation10], %s872
          %s874 = sand.u32 %s151, 1
          %s875 = smul.addr %s874, 8
          %s876 = scalar_lea.vmem [#allocation9], %s875
          %877 = dma.done %s873, 128
        $region68: #{tpu_custom_call.1} parent=59 // pred_fallthru
          _
      $region60: #{tpu_custom_call.1} parent=5 // pred_fallthru
        _
    $region6: #{tpu_custom_call.1} parent=1 // loop_footer
      %s26 = sadd.s32 1, %s22
    $region7: #{tpu_custom_call.1} parent=1 // loop_footer_branch
      %21 = sbr.rel target = $region3
    $region8: #{tpu_custom_call.1} parent=1 // loop_exit
      _
    %878 = vsyncpa [#allocation3], 1
    %s879 = scalar_lea.sflag [#allocation3], 1
    %880 = vsyncpa %s879, 1
    %881 = vsyncpa [#allocation6], 1
    %882 = vsyncpa [#allocation4], 1
    %s883 = scalar_lea.sflag [#allocation4], 1
    %884 = vsyncpa %s883, 1
    %885 = vsyncpa [#allocation10], 1
    %s886 = scalar_lea.sflag [#allocation10], 1
    %887 = vsyncpa %s886, 1

</llo_original>
